<compile_context>
chip_gen: v7x
topology: tpu7x:2x2x1
jax: 0.10.0
libtpu: 0.0.40
codegen_flags: <defaults>
</compile_context>

<pallas_src>
import functools

import jax
import jax.numpy as jnp
from jax.experimental import pallas as pl
from jax.experimental.pallas import tpu as pltpu


def _round_up(x, m):
    return (x + m - 1) // m * m


def frankenstein_kernel(x_ref, w_ref, beff_ref, y_ref, yhat_ref, lpart_ref, *, n_valid):
    """One batch tile: logits -> softmax probs + cross-entropy partials (SMEM)."""
    i = pl.program_id(0)
    tb = x_ref.shape[0]

    # MXU matmul: bf16 operands (x cast in-register; W pre-cast), f32 accumulation.
    # The per-feature shift is already folded into beff_ref, so the critical path is
    # just one matmul + softmax.
    x_bf = x_ref[...].astype(jnp.bfloat16)
    logits = jnp.dot(x_bf, w_ref[...],
                     preferred_element_type=jnp.float32) + beff_ref[...]   # (TB, C_pad) f32

    # Softmax over the lane-dense (padded) class axis. Padded class lanes carry a
    # -1e30 bias so exp underflows to exactly 0 and they contribute nothing.
    m = jnp.max(logits, axis=-1, keepdims=True)                            # (TB, 1)
    e = jnp.exp(logits - m)                                                # (TB, C_pad)
    s = jnp.sum(e, axis=-1, keepdims=True)                                 # (TB, 1)
    # Exact divide (not approx reciprocal): cost is hidden behind the HBM writeback and
    # downstream consumers get normalized probabilities.
    yhat_ref[...] = (e / s).astype(yhat_ref.dtype)

    # Cross-entropy partials: per-block (loss_sum, valid_count); mean taken in wrapper.
    labels = y_ref[...]                                                    # (TB, 1) int32
    lse = m + jnp.log(s)                                                   # (TB, 1)
    cls_idx = jax.lax.broadcasted_iota(jnp.int32, logits.shape, 1)
    picked = jnp.sum(jnp.where(cls_idx == labels, logits, 0.0),
                     axis=-1, keepdims=True)                               # logits[r, y[r]]
    row = jax.lax.broadcasted_iota(jnp.int32, (tb, 1), 0) + i * tb
    valid = (row < n_valid) & (labels != -100)   # masks ragged last block AND ignore_index
    losses = jnp.where(valid, lse - picked, 0.0)
    lpart_ref[0, 0] = jnp.sum(losses)
    lpart_ref[0, 1] = jnp.sum(valid.astype(jnp.float32))


def prepare_frankenstein_params(w_pt, bias, a_buffer, learned_p, fixed_p):
    """Done once per weight UPDATE (not per forward call): layout/cast the weight and
    fold the per-feature shift through the linear layer into an effective bias:
        (x + shift) @ W^T + b == x @ W^T + (shift @ W^T + b)
    """
    C, F = w_pt.shape
    C_pad = _round_up(C, 128)                        # lane-dense class axis
    f32 = jnp.float32

    # W^T, zero-padded to C_pad, bf16 MXU operand.
    w = jnp.zeros((F, C_pad), jnp.bfloat16).at[:, :C].set(w_pt.T.astype(jnp.bfloat16))

    shift = a_buffer.astype(f32) + learned_p.astype(f32) + fixed_p.astype(f32)
    bias_eff = shift @ w_pt.T.astype(f32) + bias.astype(f32)               # (C,) f32
    # Padded class lanes carry -1e30 so softmax exp() underflows to exactly 0 there.
    bias_eff_p = jnp.full((1, C_pad), -1e30, f32).at[0, :C].set(bias_eff)

    return {"w": w, "bias_eff": bias_eff_p, "n_classes": int(C)}


def frankenstein_compute_loss(x, y, params, *, out_dtype=jnp.bfloat16):
    """x: (B, F) f32; y: (B,) int labels (ignore_index=-100); params from
    prepare_frankenstein_params. Returns {'y_hat': (B, C) softmax probs (out_dtype),
    'y_loss': scalar f32 mean cross-entropy}."""
    B, F = x.shape
    w, bias_eff = params["w"], params["bias_eff"]
    C = params["n_classes"]
    C_pad = w.shape[1]
    f32 = jnp.float32
    out_bytes = jnp.dtype(out_dtype).itemsize

    # ---- per-generation VMEM sizing ------------------------------------------------
    try:
        info = pltpu.get_tpu_info()
        vmem_cap = int(getattr(info, "vmem_capacity_bytes", 64 * 1024 * 1024))
    except Exception:
        vmem_cap = 64 * 1024 * 1024                  # v7x-safe default
    # ~96 MiB scoped limit on v5e/v6e (128 MiB physical), ~48 MiB on v7x (64 MiB).
    vmem_limit = max(32 << 20, min(vmem_cap * 3 // 4, 100 << 20))
    budget = max(16 << 20, vmem_limit * 3 // 4)
    tb_cap = 2048 if vmem_cap >= 96 * 1024 * 1024 else 512

    def _vmem_est(tb):
        return (2 * tb * F * 4             # x f32 input, double-buffered
                + 2 * tb * 4               # labels, double-buffered
                + F * C_pad * 2            # W bf16, resident (single-buffered)
                + C_pad * 4                # bias_eff f32, resident
                + 2 * tb * C_pad * out_bytes   # y_hat, double-buffered
                + 6 * tb * C_pad * 4)      # in-kernel f32 temporaries (logits, exp, iota...)

    # Batch tile: big tiles amortize the ~0.35us/step overhead; multiples of 16 keep
    # bf16-packed rows aligned for the MXU feed.
    g = 8 if B <= 8 else 16
    TB = max(g, min(tb_cap, _round_up(B, g)))
    while TB > g and _vmem_est(TB) > budget:
        TB = max(g, _round_up(TB // 2, g))
    # v7x has 2 TensorCores: guarantee >= 2 "parallel" grid steps for mid-size batches
    # (costs nothing on single-TC v5e/v6e).
    if TB >= B and B > 2 * g:
        TB = _round_up(-(-B // 2), g)
    G = -(-B // TB)                                  # ragged last block masked in-kernel

    # NOTE: W is kept fully resident in VMEM. For very large F*C (weight no longer fits
    # the budget) this needs a class-tile grid axis ("arbitrary") with online-softmax
    # accumulation instead; not required at these model sizes.

    kernel = functools.partial(frankenstein_kernel, n_valid=B)

    cost = pl.CostEstimate(
        flops=2 * B * F * C_pad,
        transcendentals=B * (C_pad + 1),
        bytes_accessed=(B * F * 4 + F * C_pad * 2 + C_pad * 4 + B * 4
                        + B * C_pad * out_bytes + G * 8),
    )

    y2 = y.astype(jnp.int32).reshape(B, 1)           # tiny (B*4 bytes); x is passed as-is

    def _build(pin_residents):
        def _resident(shape, index_map):
            if pin_residents:
                # Grid-invariant operands: single-buffer them (no point double-buffering
                # a constant-index block; halves their VMEM footprint — matters on v7x).
                return pl.BlockSpec(shape, index_map, pipeline_mode=pl.Buffered(1))
            return pl.BlockSpec(shape, index_map)

        return pl.pallas_call(
            kernel,
            out_shape=(
                jax.ShapeDtypeStruct((B, C_pad), out_dtype),   # softmax probs
                jax.ShapeDtypeStruct((G, 2), f32),             # per-block (loss_sum, count)
            ),
            grid=(G,),
            in_specs=[
                pl.BlockSpec((TB, F), lambda i: (i, 0)),       # x (f32), batch-tiled
                _resident((F, C_pad), lambda i: (0, 0)),       # W (bf16), grid-invariant
                _resident((1, C_pad), lambda i: (0, 0)),       # folded bias (f32, -1e30 pad)
                pl.BlockSpec((TB, 1), lambda i: (i, 0)),       # labels (int32)
            ],
            out_specs=(
                pl.BlockSpec((TB, C_pad), lambda i: (i, 0)),   # lane-dense y_hat
                pl.BlockSpec((1, 2), lambda i: (i, 0),
                             memory_space=pltpu.MemorySpace.SMEM),  # scalar partials
            ),
            compiler_params=pltpu.CompilerParams(
                dimension_semantics=("parallel",),
                vmem_limit_bytes=vmem_limit,
            ),
            cost_estimate=cost,
        )

    try:
        y_hat_pad, partials = _build(True)(x, w, bias_eff, y2)
    except Exception:
        # Fallback for JAX builds without BlockSpec pipeline_mode / pl.Buffered(1) support.
        y_hat_pad, partials = _build(False)(x, w, bias_eff, y2)

    # Slice only the class padding (and only when it exists); batch axis is exact.
    y_hat = y_hat_pad if C_pad == C else y_hat_pad[:, :C]
    # 0/0 -> NaN when every label is ignore_index, matching PyTorch's mean reduction.
    y_loss = jnp.sum(partials[:, 0]) / jnp.sum(partials[:, 1])
    return {"y_hat": y_hat, "y_loss": y_loss}


if __name__ == "__main__":
    # Small shapes implied by the module: batch, n_features, n_classes.
    batch_size, n_features, n_classes = 8, 32, 8

    key = jax.random.PRNGKey(0)
    kx, ky, kw, kb, kbuf, klp, kfp = jax.random.split(key, 7)

    dummy_x = jax.random.normal(kx, (batch_size, n_features), dtype=jnp.float32)
    dummy_y = jax.random.randint(ky, (batch_size,), 0, n_classes, dtype=jnp.int32)

    # FrankensteinModel parameters:
    #   nn.Linear(n_features, n_classes): weight (C, F), bias (C,)
    #   a_buffer / learned_p / fixed_p: (F,)
    w_pt = jax.random.normal(kw, (n_classes, n_features), dtype=jnp.float32) * 0.1
    bias = jax.random.normal(kb, (n_classes,), dtype=jnp.float32) * 0.1
    a_buffer = jax.random.normal(kbuf, (n_features,), dtype=jnp.float32)
    learned_p = jax.random.normal(klp, (n_features,), dtype=jnp.float32)
    fixed_p = jax.random.normal(kfp, (n_features,), dtype=jnp.float32)

    # Weight prep is hoisted out of the per-call path (once per weight update).
    params = prepare_frankenstein_params(w_pt, bias, a_buffer, learned_p, fixed_p)
    out = frankenstein_compute_loss(dummy_x, dummy_y, params)
    jax.block_until_ready(out)

    # Pure-JAX f32 reference for a correctness sanity check.
    shift = a_buffer + learned_p + fixed_p
    logits_ref = (dummy_x + shift) @ w_pt.T + bias
    yhat_ref = jax.nn.softmax(logits_ref, axis=1)
    lse_ref = jax.scipy.special.logsumexp(logits_ref, axis=1)
    loss_ref = jnp.mean(lse_ref - logits_ref[jnp.arange(batch_size), dummy_y])

    y_hat = out["y_hat"].astype(jnp.float32)
    row_sums = jnp.sum(y_hat, axis=-1)
    assert bool(jnp.all(jnp.abs(row_sums - 1.0) < 2e-2))
    assert bool(jnp.isfinite(out["y_loss"]))
    # bf16 matmul operands + bf16 y_hat writeback => loose tolerance vs f32 reference.
    assert bool(jnp.max(jnp.abs(y_hat - yhat_ref)) < 5e-2)
    assert bool(jnp.abs(out["y_loss"] - loss_ref) < 5e-2)

    print("KERNEL_OK")
</pallas_src>

<mosaic_0001>
module attributes {stable_mosaic.version = 11 : i64} {
  func.func @frankenstein_kernel(%arg0: i32, %arg1: memref<8x32xf32, #tpu.memory_space<vmem>>, %arg2: memref<32x128xbf16, #tpu.memory_space<vmem>>, %arg3: memref<1x128xf32, #tpu.memory_space<vmem>>, %arg4: memref<8x1xi32, #tpu.memory_space<vmem>>, %arg5: memref<8x128xbf16, #tpu.memory_space<vmem>>, %arg6: memref<1x2xf32, #tpu.memory_space<smem>>) attributes {dimension_semantics = [#tpu.dimension_semantics<parallel>], iteration_bounds = array<i64: 1>, scalar_prefetch = 0 : i64, scratch_operands = 0 : i64, tpu.core_type = #tpu.core_type<tc>, window_params = [{transform_indices = @transform_0, window_bounds = array<i64: 8, 32>}, {pipeline_mode = #tpu.pipeline_mode<synchronous>, transform_indices = @transform_1, window_bounds = array<i64: 32, 128>}, {pipeline_mode = #tpu.pipeline_mode<synchronous>, transform_indices = @transform_2, window_bounds = array<i64: 1, 128>}, {transform_indices = @transform_3, window_bounds = array<i64: 8, 1>}, {transform_indices = @transform_4, window_bounds = array<i64: 8, 128>}, {transform_indices = @transform_5, window_bounds = array<i64: 1, 2>}]} {
    %c0 = arith.constant 0 : index
    %c0_0 = arith.constant 0 : index
    %0 = vector.load %arg1[%c0, %c0_0] : memref<8x32xf32, #tpu.memory_space<vmem>>, vector<8x32xf32>
    %1 = arith.truncf %0 : vector<8x32xf32> to vector<8x32xbf16>
    %c0_1 = arith.constant 0 : index
    %c0_2 = arith.constant 0 : index
    %2 = vector.load %arg2[%c0_1, %c0_2] : memref<32x128xbf16, #tpu.memory_space<vmem>>, vector<32x128xbf16>
    %cst = arith.constant dense<0.000000e+00> : vector<8x128xf32>
    %3 = tpu.matmul %1, %2, %cst {dimension_numbers = #tpu.dot_dimension_numbers<[1], [0], [0], [1], [0, 0, 1, 1], [], []>} : vector<8x32xbf16>, vector<32x128xbf16>, vector<8x128xf32> -> vector<8x128xf32>
    %c0_3 = arith.constant 0 : index
    %c0_4 = arith.constant 0 : index
    %4 = vector.load %arg3[%c0_3, %c0_4] : memref<1x128xf32, #tpu.memory_space<vmem>>, vector<1x128xf32>
    %5 = vector.broadcast %4 : vector<1x128xf32> to vector<8x128xf32>
    %6 = arith.addf %3, %5 : vector<8x128xf32>
    %cst_5 = arith.constant dense<0xFF800000> : vector<8xf32>
    %7 = vector.multi_reduction <maximumf>, %6, %cst_5 [1] : vector<8x128xf32> to vector<8xf32>
    %8 = vector.shape_cast %7 : vector<8xf32> to vector<8x1xf32>
    %9 = vector.broadcast %8 : vector<8x1xf32> to vector<8x128xf32>
    %10 = arith.subf %6, %9 : vector<8x128xf32>
    %11 = math.exp %10 : vector<8x128xf32>
    %cst_6 = arith.constant dense<0.000000e+00> : vector<8xf32>
    %12 = vector.multi_reduction <add>, %11, %cst_6 [1] : vector<8x128xf32> to vector<8xf32>
    %13 = vector.shape_cast %12 : vector<8xf32> to vector<8x1xf32>
    %14 = vector.broadcast %13 : vector<8x1xf32> to vector<8x128xf32>
    %15 = arith.divf %11, %14 : vector<8x128xf32>
    %16 = arith.truncf %15 : vector<8x128xf32> to vector<8x128xbf16>
    %c0_7 = arith.constant 0 : index
    %c0_8 = arith.constant 0 : index
    %17 = vector.load %arg5[%c0_7, %c0_8] : memref<8x128xbf16, #tpu.memory_space<vmem>>, vector<8x128xbf16>
    tpu.vector_store %arg5[%c0_7, %c0_8], %16 {strides = array<i32>} : memref<8x128xbf16, #tpu.memory_space<vmem>>, vector<8x128xbf16>,
    %c0_9 = arith.constant 0 : index
    %c0_10 = arith.constant 0 : index
    %18 = vector.load %arg4[%c0_9, %c0_10] : memref<8x1xi32, #tpu.memory_space<vmem>>, vector<8x1xi32>
    %19 = math.log %13 : vector<8x1xf32>
    %20 = arith.addf %8, %19 : vector<8x1xf32>
    %21 = tpu.iota {dimensions = array<i32: 1>} : vector<8x128xi32>
    %22 = vector.broadcast %18 : vector<8x1xi32> to vector<8x128xi32>
    %23 = arith.cmpi eq, %21, %22 : vector<8x128xi32>
    %cst_11 = arith.constant 0.000000e+00 : f32
    %24 = vector.broadcast %cst_11 : f32 to vector<8x128xf32>
    %25 = arith.select %23, %6, %24 : vector<8x128xi1>, vector<8x128xf32>
    %cst_12 = arith.constant dense<0.000000e+00> : vector<8xf32>
    %26 = vector.multi_reduction <add>, %25, %cst_12 [1] : vector<8x128xf32> to vector<8xf32>
    %27 = vector.shape_cast %26 : vector<8xf32> to vector<8x1xf32>
    %28 = tpu.iota {dimensions = array<i32: 0>} : vector<8x1xi32>
    %c8_i32 = arith.constant 8 : i32
    %29 = arith.muli %arg0, %c8_i32 : i32
    %30 = vector.broadcast %29 : i32 to vector<8x1xi32>
    %31 = arith.addi %28, %30 : vector<8x1xi32>
    %c8_i32_13 = arith.constant 8 : i32
    %32 = vector.broadcast %c8_i32_13 : i32 to vector<8x1xi32>
    %33 = arith.cmpi slt, %31, %32 : vector<8x1xi32>
    %c-100_i32 = arith.constant -100 : i32
    %34 = vector.broadcast %c-100_i32 : i32 to vector<8x1xi32>
    %35 = arith.cmpi ne, %18, %34 : vector<8x1xi32>
    %36 = arith.andi %33, %35 : vector<8x1xi1>
    %37 = arith.subf %20, %27 : vector<8x1xf32>
    %cst_14 = arith.constant 0.000000e+00 : f32
    %38 = vector.broadcast %cst_14 : f32 to vector<8x1xf32>
    %39 = arith.select %36, %37, %38 : vector<8x1xi1>, vector<8x1xf32>
    %40 = vector.shape_cast %39 : vector<8x1xf32> to vector<1x8x1xf32>
    %cst_15 = arith.constant dense<0.000000e+00> : vector<1xf32>
    %41 = vector.multi_reduction <add>, %40, %cst_15 [1, 2] : vector<1x8x1xf32> to vector<1xf32>
    %42 = vector.shape_cast %41 : vector<1xf32> to vector<1x1x1xf32>
    %43 = vector.extract %42[0, 0, 0] : f32 from vector<1x1x1xf32>
    %c0_16 = arith.constant 0 : index
    %c0_17 = arith.constant 0 : index
    %44 = memref.load %arg6[%c0_16, %c0_17] : memref<1x2xf32, #tpu.memory_space<smem>>
    memref.store %43, %arg6[%c0_16, %c0_17] : memref<1x2xf32, #tpu.memory_space<smem>>
    %45 = arith.extui %36 : vector<8x1xi1> to vector<8x1xi32>
    %46 = arith.sitofp %45 : vector<8x1xi32> to vector<8x1xf32>
    %47 = vector.shape_cast %46 : vector<8x1xf32> to vector<1x8x1xf32>
    %cst_18 = arith.constant dense<0.000000e+00> : vector<1xf32>
    %48 = vector.multi_reduction <add>, %47, %cst_18 [1, 2] : vector<1x8x1xf32> to vector<1xf32>
    %49 = vector.shape_cast %48 : vector<1xf32> to vector<1x1x1xf32>
    %50 = vector.extract %49[0, 0, 0] : f32 from vector<1x1x1xf32>
    %c0_19 = arith.constant 0 : index
    %c1 = arith.constant 1 : index
    %51 = memref.load %arg6[%c0_19, %c1] : memref<1x2xf32, #tpu.memory_space<smem>>
    memref.store %50, %arg6[%c0_19, %c1] : memref<1x2xf32, #tpu.memory_space<smem>>
    return
  }
  func.func @transform_0(%arg0: i32) -> (i32, i32) {
    %c0_i32 = arith.constant 0 : i32
    %c0_i32_0 = arith.constant 0 : i32
    return %arg0, %c0_i32 : i32, i32
  }
  func.func @transform_1(%arg0: i32) -> (i32, i32) {
    %c0_i32 = arith.constant 0 : i32
    %c0_i32_0 = arith.constant 0 : i32
    %c0_i32_1 = arith.constant 0 : i32
    return %c0_i32, %c0_i32_0 : i32, i32
  }
  func.func @transform_2(%arg0: i32) -> (i32, i32) {
    %c0_i32 = arith.constant 0 : i32
    %c0_i32_0 = arith.constant 0 : i32
    %c0_i32_1 = arith.constant 0 : i32
    return %c0_i32, %c0_i32_0 : i32, i32
  }
  func.func @transform_3(%arg0: i32) -> (i32, i32) {
    %c0_i32 = arith.constant 0 : i32
    %c0_i32_0 = arith.constant 0 : i32
    return %arg0, %c0_i32 : i32, i32
  }
  func.func @transform_4(%arg0: i32) -> (i32, i32) {
    %c0_i32 = arith.constant 0 : i32
    %c0_i32_0 = arith.constant 0 : i32
    return %arg0, %c0_i32 : i32, i32
  }
  func.func @transform_5(%arg0: i32) -> (i32, i32) {
    %c0_i32 = arith.constant 0 : i32
    %c0_i32_0 = arith.constant 0 : i32
    return %arg0, %c0_i32 : i32, i32
  }
}

module attributes {stable_mosaic.version = 11 : i64} {
  func.func @frankenstein_kernel(%arg0: i32, %arg1: memref<8x32xf32, #tpu.memory_space<vmem>>, %arg2: memref<32x128xbf16, #tpu.memory_space<vmem>>, %arg3: memref<1x128xf32, #tpu.memory_space<vmem>>, %arg4: memref<8x1xi32, #tpu.memory_space<vmem>>, %arg5: memref<8x128xbf16, #tpu.memory_space<vmem>>, %arg6: memref<1x2xf32, #tpu.memory_space<smem>>) attributes {dimension_semantics = [#tpu.dimension_semantics<parallel>], iteration_bounds = array<i64: 1>, scalar_prefetch = 0 : i64, scratch_operands = 0 : i64, tpu.core_type = #tpu.core_type<tc>, window_params = [{transform_indices = @transform_0, window_bounds = array<i64: 8, 32>}, {pipeline_mode = #tpu.pipeline_mode<synchronous>, transform_indices = @transform_1, window_bounds = array<i64: 32, 128>}, {pipeline_mode = #tpu.pipeline_mode<synchronous>, transform_indices = @transform_2, window_bounds = array<i64: 1, 128>}, {transform_indices = @transform_3, window_bounds = array<i64: 8, 1>}, {transform_indices = @transform_4, window_bounds = array<i64: 8, 128>}, {transform_indices = @transform_5, window_bounds = array<i64: 1, 2>}]} {
    %c0 = arith.constant 0 : index
    %c0_0 = arith.constant 0 : index
    %0 = vector.load %arg1[%c0, %c0_0] : memref<8x32xf32, #tpu.memory_space<vmem>>, vector<8x32xf32>
    %1 = arith.truncf %0 : vector<8x32xf32> to vector<8x32xbf16>
    %c0_1 = arith.constant 0 : index
    %c0_2 = arith.constant 0 : index
    %2 = vector.load %arg2[%c0_1, %c0_2] : memref<32x128xbf16, #tpu.memory_space<vmem>>, vector<32x128xbf16>
    %cst = arith.constant dense<0.000000e+00> : vector<8x128xf32>
    %3 = tpu.matmul %1, %2, %cst {dimension_numbers = #tpu.dot_dimension_numbers<[1], [0], [0], [1], [0, 0, 1, 1], [], []>} : vector<8x32xbf16>, vector<32x128xbf16>, vector<8x128xf32> -> vector<8x128xf32>
    %c0_3 = arith.constant 0 : index
    %c0_4 = arith.constant 0 : index
    %4 = vector.load %arg3[%c0_3, %c0_4] : memref<1x128xf32, #tpu.memory_space<vmem>>, vector<1x128xf32>
    %5 = vector.broadcast %4 : vector<1x128xf32> to vector<8x128xf32>
    %6 = arith.addf %3, %5 : vector<8x128xf32>
    %cst_5 = arith.constant dense<0xFF800000> : vector<8xf32>
    %7 = vector.multi_reduction <maximumf>, %6, %cst_5 [1] : vector<8x128xf32> to vector<8xf32>
    %8 = vector.shape_cast %7 : vector<8xf32> to vector<8x1xf32>
    %9 = vector.broadcast %8 : vector<8x1xf32> to vector<8x128xf32>
    %10 = arith.subf %6, %9 : vector<8x128xf32>
    %11 = math.exp %10 : vector<8x128xf32>
    %cst_6 = arith.constant dense<0.000000e+00> : vector<8xf32>
    %12 = vector.multi_reduction <add>, %11, %cst_6 [1] : vector<8x128xf32> to vector<8xf32>
    %13 = vector.shape_cast %12 : vector<8xf32> to vector<8x1xf32>
    %14 = vector.broadcast %13 : vector<8x1xf32> to vector<8x128xf32>
    %15 = arith.divf %11, %14 : vector<8x128xf32>
    %16 = arith.truncf %15 : vector<8x128xf32> to vector<8x128xbf16>
    %c0_7 = arith.constant 0 : index
    %c0_8 = arith.constant 0 : index
    %17 = vector.load %arg5[%c0_7, %c0_8] : memref<8x128xbf16, #tpu.memory_space<vmem>>, vector<8x128xbf16>
    tpu.vector_store %arg5[%c0_7, %c0_8], %16 {strides = array<i32>} : memref<8x128xbf16, #tpu.memory_space<vmem>>, vector<8x128xbf16>,
    %c0_9 = arith.constant 0 : index
    %c0_10 = arith.constant 0 : index
    %18 = vector.load %arg4[%c0_9, %c0_10] : memref<8x1xi32, #tpu.memory_space<vmem>>, vector<8x1xi32>
    %19 = math.log %13 : vector<8x1xf32>
    %20 = arith.addf %8, %19 : vector<8x1xf32>
    %21 = tpu.iota {dimensions = array<i32: 1>} : vector<8x128xi32>
    %22 = vector.broadcast %18 : vector<8x1xi32> to vector<8x128xi32>
    %23 = arith.cmpi eq, %21, %22 : vector<8x128xi32>
    %cst_11 = arith.constant 0.000000e+00 : f32
    %24 = vector.broadcast %cst_11 : f32 to vector<8x128xf32>
    %25 = arith.select %23, %6, %24 : vector<8x128xi1>, vector<8x128xf32>
    %cst_12 = arith.constant dense<0.000000e+00> : vector<8xf32>
    %26 = vector.multi_reduction <add>, %25, %cst_12 [1] : vector<8x128xf32> to vector<8xf32>
    %27 = vector.shape_cast %26 : vector<8xf32> to vector<8x1xf32>
    %28 = tpu.iota {dimensions = array<i32: 0>} : vector<8x1xi32>
    %c8_i32 = arith.constant 8 : i32
    %29 = arith.muli %arg0, %c8_i32 : i32
    %30 = vector.broadcast %29 : i32 to vector<8x1xi32>
    %31 = arith.addi %28, %30 : vector<8x1xi32>
    %c8_i32_13 = arith.constant 8 : i32
    %32 = vector.broadcast %c8_i32_13 : i32 to vector<8x1xi32>
    %33 = arith.cmpi slt, %31, %32 : vector<8x1xi32>
    %c-100_i32 = arith.constant -100 : i32
    %34 = vector.broadcast %c-100_i32 : i32 to vector<8x1xi32>
    %35 = arith.cmpi ne, %18, %34 : vector<8x1xi32>
    %36 = arith.andi %33, %35 : vector<8x1xi1>
    %37 = arith.subf %20, %27 : vector<8x1xf32>
    %cst_14 = arith.constant 0.000000e+00 : f32
    %38 = vector.broadcast %cst_14 : f32 to vector<8x1xf32>
    %39 = arith.select %36, %37, %38 : vector<8x1xi1>, vector<8x1xf32>
    %40 = vector.shape_cast %39 : vector<8x1xf32> to vector<1x8x1xf32>
    %cst_15 = arith.constant dense<0.000000e+00> : vector<1xf32>
    %41 = vector.multi_reduction <add>, %40, %cst_15 [1, 2] : vector<1x8x1xf32> to vector<1xf32>
    %42 = vector.shape_cast %41 : vector<1xf32> to vector<1x1x1xf32>
    %43 = vector.extract %42[0, 0, 0] : f32 from vector<1x1x1xf32>
    %c0_16 = arith.constant 0 : index
    %c0_17 = arith.constant 0 : index
    %44 = memref.load %arg6[%c0_16, %c0_17] : memref<1x2xf32, #tpu.memory_space<smem>>
    memref.store %43, %arg6[%c0_16, %c0_17] : memref<1x2xf32, #tpu.memory_space<smem>>
    %45 = arith.extui %36 : vector<8x1xi1> to vector<8x1xi32>
    %46 = arith.sitofp %45 : vector<8x1xi32> to vector<8x1xf32>
    %47 = vector.shape_cast %46 : vector<8x1xf32> to vector<1x8x1xf32>
    %cst_18 = arith.constant dense<0.000000e+00> : vector<1xf32>
    %48 = vector.multi_reduction <add>, %47, %cst_18 [1, 2] : vector<1x8x1xf32> to vector<1xf32>
    %49 = vector.shape_cast %48 : vector<1xf32> to vector<1x1x1xf32>
    %50 = vector.extract %49[0, 0, 0] : f32 from vector<1x1x1xf32>
    %c0_19 = arith.constant 0 : index
    %c1 = arith.constant 1 : index
    %51 = memref.load %arg6[%c0_19, %c1] : memref<1x2xf32, #tpu.memory_space<smem>>
    memref.store %50, %arg6[%c0_19, %c1] : memref<1x2xf32, #tpu.memory_space<smem>>
    return
  }
  func.func @transform_0(%arg0: i32) -> (i32, i32) {
    %c0_i32 = arith.constant 0 : i32
    %c0_i32_0 = arith.constant 0 : i32
    return %arg0, %c0_i32 : i32, i32
  }
  func.func @transform_1(%arg0: i32) -> (i32, i32) {
    %c0_i32 = arith.constant 0 : i32
    %c0_i32_0 = arith.constant 0 : i32
    %c0_i32_1 = arith.constant 0 : i32
    return %c0_i32, %c0_i32_0 : i32, i32
  }
  func.func @transform_2(%arg0: i32) -> (i32, i32) {
    %c0_i32 = arith.constant 0 : i32
    %c0_i32_0 = arith.constant 0 : i32
    %c0_i32_1 = arith.constant 0 : i32
    return %c0_i32, %c0_i32_0 : i32, i32
  }
  func.func @transform_3(%arg0: i32) -> (i32, i32) {
    %c0_i32 = arith.constant 0 : i32
    %c0_i32_0 = arith.constant 0 : i32
    return %arg0, %c0_i32 : i32, i32
  }
  func.func @transform_4(%arg0: i32) -> (i32, i32) {
    %c0_i32 = arith.constant 0 : i32
    %c0_i32_0 = arith.constant 0 : i32
    return %arg0, %c0_i32 : i32, i32
  }
  func.func @transform_5(%arg0: i32) -> (i32, i32) {
    %c0_i32 = arith.constant 0 : i32
    %c0_i32_0 = arith.constant 0 : i32
    return %arg0, %c0_i32 : i32, i32
  }
}

</mosaic_0001>

<llo_original>
// kernel: tpu_custom_call.1
$region0: #{tpu_custom_call.1}
  #allocation0 [shape = 'u32[]', space=smem, size = 0x4, offset = 0x4, fixed_abs, tag = 'smem constant byte address 0x4 - core index']
  #allocation1 [shape = 'u32[144,128]{1,0:T(1,128)}', space=vmem, size = 0x12000, scoped, tag = 'internal scratch']
  %s0 = inlined_call_operand.vmem [shape: f32[8,32], index: 0, kind: input, shape index: {}]
  %s1 = inlined_call_operand.hbm [shape: bf16[32,128], index: 1, kind: input, shape index: {}]
  %s2 = inlined_call_operand.vmem [shape: f32[1,128], index: 2, kind: input, shape index: {}]
  %s3 = inlined_call_operand.vmem [shape: s32[8,1], index: 3, kind: input, shape index: {}]
  %s4 = inlined_call_operand.hbm [shape: bf16[8,128], index: 4, kind: output, shape index: {0}]
  %s5 = inlined_call_operand.hbm [shape: f32[1,2], index: 5, kind: output, shape index: {1}]
  %6 = xla_tuple %s4, %s5
  %s7 = sld [smem:[#allocation0]]
  $region38: #{tpu_custom_call.1} parent=0
    _
  %s9 = ssub.s32 1, %s7
  %s10 = scalar_select 0, %s9, %s7
  $region1: #{tpu_custom_call.1} parent=0
    #allocation2 [shape = 'u8[8192]{0}', space=vmem, size = 0x2000, scoped, tag = 'input window, operand 1, single buffered']
    #allocation3 [shape = 's32[1]{0}', space=sflag, size = 0x4, scoped, tag = 'scoped memory for tpu_custom_call.1']
    #allocation4 [shape = 's32[1]{0}', space=sflag, size = 0x4, scoped, tag = 'scoped memory for tpu_custom_call.1']
    #allocation5 [shape = 's32[1]{0}', space=sflag, size = 0x4, scoped, tag = 'scoped memory for tpu_custom_call.1']
    #allocation6 [shape = 'u8[2048]{0}', space=vmem, size = 0x800, scoped, tag = 'output window, operand 0, single buffered']
    #allocation7 [shape = 'u8[512]{0}', space=smem, size = 0x200, scoped, tag = 'output window, operand 1, single buffered']
    %11 = vsyncpa [#allocation3], 0
    %12 = vsyncpa [#allocation4], 0
    %13 = vsyncpa [#allocation5], 0
    // Predicated region
    $region2: #{tpu_custom_call.1} parent=1 // pred_check
      _
    $region3: #{tpu_custom_call.1} parent=1 // pred_check_branch
      %15 = sbr.rel (0) target = $region5
    $region4: #{tpu_custom_call.1} parent=1 // pred_region
      _
    $region5: #{tpu_custom_call.1} parent=1 // pred_fallthru
      _
    // Predicated region
    $region6: #{tpu_custom_call.1} parent=1 // pred_check
      _
    $region7: #{tpu_custom_call.1} parent=1 // pred_check_branch
      %17 = sbr.rel (0) target = $region9
    $region8: #{tpu_custom_call.1} parent=1 // pred_region
      %s19 = ssub.s32 256, 256
      %20 = vsyncadd [#allocation3], %s19
      %s21 = sshll.u32 [#allocation2], 4
      %s22 = int_to_ptr.vmem [resolvable:$true] %s21
      %27 = dma.hbm_to_vmem [thread:$0]  %s1, 256, %s22, [#allocation3], 64, 64, 4
    $region9: #{tpu_custom_call.1} parent=1 // pred_fallthru
      _
    // Predicated region
    $region10: #{tpu_custom_call.1} parent=1 // pred_check
      _
    $region11: #{tpu_custom_call.1} parent=1 // pred_check_branch
      %29 = sbr.rel (0) target = $region13
    $region12: #{tpu_custom_call.1} parent=1 // pred_region
      _
    $region13: #{tpu_custom_call.1} parent=1 // pred_fallthru
      _
    // Predicated region
    $region14: #{tpu_custom_call.1} parent=1 // pred_check
      _
    $region15: #{tpu_custom_call.1} parent=1 // pred_check_branch
      %31 = sbr.rel (0) target = $region17
    $region16: #{tpu_custom_call.1} parent=1 // pred_region
      _
    $region17: #{tpu_custom_call.1} parent=1 // pred_fallthru
      _
    // Predicated region
    $region18: #{tpu_custom_call.1} parent=1 // pred_check
      _
    $region19: #{tpu_custom_call.1} parent=1 // pred_check_branch
      %33 = sbr.rel (0) target = $region21
    $region20: #{tpu_custom_call.1} parent=1 // pred_region
      %34 = dma.done [#allocation3], 256
    $region21: #{tpu_custom_call.1} parent=1 // pred_fallthru
      _
    %v36 = vld [vmem:[%s0] sm:$0xff]
    %v37 = vpack.c.bf16 %v36, %v36
    %v38 = vld [vmem:[#allocation2] sm:$0xf]
    %v39 = vld [vmem:[#allocation2 + $0x4] sm:$0xf]
    %v40 = vld [vmem:[#allocation2 + $0x8] sm:$0xf]
    %v41 = vld [vmem:[#allocation2 + $0xc] sm:$0xf]
    %v42 = vld [vmem:[%s2] sm:$0x1]
    %v44 = vlaneseq
    %v45 = vshrl.u32 %v44, 7
    %v46 = vsub.s32 0, %v45
    %v47 = vrot.slane %v42, %v46
    %v53 = vunpack.c.l.b16 %v38
    %v54 = vunpack.c.l.b16 %v39
    %v55 = vunpack.c.l.b16 %v40
    %v56 = vunpack.c.l.b16 %v41
    %v57 = vpack.c.b16 %v54, %v53
    %v58 = vpack.c.b16 %v56, %v55
    %vm61 = vcmask 261120
    %v63 = vsel %vm61, %v37, 0
    %65 = vmatprep.subr.bf16.mxu0 0
    %66 = vmatpush1.bf16.msra.mxu0 %v57
    %67 = vmatprep.subr.bf16.mxu0 0
    %68 = vmatpush1.bf16.msra.mxu0 %v58
    %69 = vmatprep.subr.bf16.mxu0 0
    %70 = vmatpush1.bf16.msra.mxu0 0
    %71 = vmatprep.subr.bf16.mxu0 0
    %72 = vmatpush1.bf16.msra.mxu0 0
    %73 = vmatprep.subr.bf16.mxu0 0
    %74 = vmatpush1.bf16.msra.mxu0 0
    %75 = vmatprep.subr.bf16.mxu0 0
    %76 = vmatpush1.bf16.msra.mxu0 0
    %77 = vmatprep.subr.bf16.mxu0 0
    %78 = vmatpush1.bf16.msra.mxu0 0
    %79 = vmatprep.subr.bf16.mxu0 0
    %80 = vmatpush1.bf16.msra.mxu0 0
    %81 = vmatprep.subr.bf16.mxu0 0
    %82 = vmatpush1.bf16.msra.mxu0 0
    %83 = vmatprep.subr.bf16.mxu0 0
    %84 = vmatpush1.bf16.msra.mxu0 0
    %85 = vmatprep.subr.bf16.mxu0 0
    %86 = vmatpush1.bf16.msra.mxu0 0
    %87 = vmatprep.subr.bf16.mxu0 0
    %88 = vmatpush1.bf16.msra.mxu0 0
    %89 = vmatprep.subr.bf16.mxu0 0
    %90 = vmatpush1.bf16.msra.mxu0 0
    %91 = vmatprep.subr.bf16.mxu0 0
    %92 = vmatpush1.bf16.msra.mxu0 0
    %93 = vmatprep.subr.bf16.mxu0 0
    %94 = vmatpush1.bf16.msra.mxu0 0
    %95 = vmatprep.subr.bf16.mxu0 0
    %96 = vmatpush1.bf16.msra.mxu0 0
    %97 = vmatprep.mubr.bf16.mxu0 0
    %98 = vmatmul.mubr.bf16.gmra.mrb[0].mxu0 %v63
    %v99 = vpop.f32.mrb[0].mxu0
    %v100 = vadd.f32 %v47, %v99
    %v101 = vpop.f32.mrb[0].mxu0
    %v102 = vpop.f32.mrb[0].mxu0
    %v103 = vpop.f32.mrb[0].mxu0
    %104 = vdwg.mxu0
    %105 = vmax.xlane.f32.xlu0 %v100
    %v106 = vpop.xlane.xlu0 %105
    %v107 = vsub.f32 %v100, %v106
    %v108 = vmul.f32 %v107, 1.442695
    %v109 = vpow.pop %v108
    %110 = vadd.xlane.f32.xlu0 %v109
    %v111 = vpop.xlane.xlu0 %110
    %v112 = vrcp.pop %v111
    %v113 = vmul.f32 %v109, %v112
    %v114 = vpack.c.bf16 %v113, %v113
    %115 = vst [vmem:[#allocation6] sm:$0xf] %v114
    %v116 = vld [vmem:[%s3] sm:$0xff]
    %v117 = vlog2.pop %v111
    %v118 = vmul.f32 %v117, 0.6931472
    %v119 = vadd.f32 %v106, %v118
    %v120 = vlaneseq
    %v121 = vand.u32 %v120, 127
    %122 = vset.pattern.permute.xlu0 0
    %123 = vperm.xlu0 %122, %v116
    %v124 = vpop.permute.xlu0 %123
    %vm125 = vcmp.eq.s32.totalorder %v121, %v124
    %v126 = vsel %vm125, %v100, 0.0
    %127 = vadd.xlane.f32.xlu0 %v126
    %v128 = vpop.xlane.xlu0 %127
    %v129 = vlaneseq
    %v130 = vshrl.u32 %v129, 7
    %s131 = smul.u32 0, 8
    %v132 = vstv %s131
    %v133 = vadd.s32 %v130, %v132
    %vm134 = vcmp.lt.s32.totalorder %v133, 8
    %vm135 = vcmp.ne.s32.totalorder %v116, 4294967196
    %vm136 = vmand %vm134, %vm135
    %v137 = vsub.f32 %v119, %v128
    %v138 = vsel %vm136, %v137, 0.0
    %vm139 = vcmask 7168
    %v140 = vsel %vm139, %v138, 0.0
    %141 = vadd.xlane.f32.xlu0 %v140
    %v142 = vpop.xlane.xlu0 %141
    %v143 = vrot.slane %v142, 4
    %v144 = vadd.f32 %v142, %v143
    %v145 = vrot.slane %v144, 2
    %v146 = vadd.f32 %v144, %v145
    %v147 = vrot.slane %v146, 1
    %v148 = vadd.f32 %v146, %v147
    %s149 = vtos %v148
    %s150 = scalar_lea.smem [#allocation7], 0
    %151 = sst [smem:[%s150]] %s149
    %v152 = vsel %vm136, 1, 0
    %v153 = vcvt.s32.f32 %v152
    %v154 = vsel %vm139, %v153, 0.0
    %155 = vadd.xlane.f32.xlu0 %v154
    %v156 = vpop.xlane.xlu0 %155
    %v157 = vrot.slane %v156, 4
    %v158 = vadd.f32 %v156, %v157
    %v159 = vrot.slane %v158, 2
    %v160 = vadd.f32 %v158, %v159
    %v161 = vrot.slane %v160, 1
    %v162 = vadd.f32 %v160, %v161
    %s163 = vtos %v162
    %s164 = scalar_lea.smem [#allocation7], 1
    %165 = sst [smem:[%s164]] %s163
    // Predicated region
    $region22: #{tpu_custom_call.1} parent=1 // pred_check
      _
    $region23: #{tpu_custom_call.1} parent=1 // pred_check_branch
      %167 = sbr.rel (0) target = $region25
    $region24: #{tpu_custom_call.1} parent=1 // pred_region
      %s169 = ssub.s32 64, 64
      %170 = vsyncadd [#allocation4], %s169
      %s172 = sshll.u32 [#allocation6], 4
      %s173 = int_to_ptr.vmem [resolvable:$true] %s172
      %175 = dma.vmem_to_hbm [thread:$0]  %s173, 64, %s4, [#allocation4]
    $region25: #{tpu_custom_call.1} parent=1 // pred_fallthru
      _
    // Predicated region
    $region26: #{tpu_custom_call.1} parent=1 // pred_check
      _
    $region27: #{tpu_custom_call.1} parent=1 // pred_check_branch
      %177 = sbr.rel (0) target = $region29
    $region28: #{tpu_custom_call.1} parent=1 // pred_region
      %s179 = ssub.s32 16, 16
      %180 = vsyncadd [#allocation5], %s179
      %183 = dma.smem_to_hbm [#allocation7], 16, %s5, [#allocation5]
    $region29: #{tpu_custom_call.1} parent=1 // pred_fallthru
      _
    // Predicated region
    $region30: #{tpu_custom_call.1} parent=1 // pred_check
      _
    $region31: #{tpu_custom_call.1} parent=1 // pred_check_branch
      %185 = sbr.rel (0) target = $region33
    $region32: #{tpu_custom_call.1} parent=1 // pred_region
      %186 = dma.done [#allocation4], 64
    $region33: #{tpu_custom_call.1} parent=1 // pred_fallthru
      _
    // Predicated region
    $region34: #{tpu_custom_call.1} parent=1 // pred_check
      _
    $region35: #{tpu_custom_call.1} parent=1 // pred_check_branch
      %188 = sbr.rel (0) target = $region37
    $region36: #{tpu_custom_call.1} parent=1 // pred_region
      %189 = dma.done [#allocation5], 16
    $region37: #{tpu_custom_call.1} parent=1 // pred_fallthru
      _
    %190 = sfence
    %191 = vsyncpa [#allocation3], 1
    %192 = vsyncpa [#allocation4], 1
    %193 = vsyncpa [#allocation5], 1

// kernel: tpu_custom_call.1
$region0: #{tpu_custom_call.1}
  #allocation0 [shape = 'u32[]', space=smem, size = 0x4, offset = 0x4, fixed_abs, tag = 'smem constant byte address 0x4 - core index']
  #allocation1 [shape = 'u32[144,128]{1,0:T(1,128)}', space=vmem, size = 0x12000, scoped, tag = 'internal scratch']
  %s0 = inlined_call_operand.vmem [shape: f32[8,32], index: 0, kind: input, shape index: {}]
  %s1 = inlined_call_operand.hbm [shape: bf16[32,128], index: 1, kind: input, shape index: {}]
  %s2 = inlined_call_operand.vmem [shape: f32[1,128], index: 2, kind: input, shape index: {}]
  %s3 = inlined_call_operand.vmem [shape: s32[8,1], index: 3, kind: input, shape index: {}]
  %s4 = inlined_call_operand.hbm [shape: bf16[8,128], index: 4, kind: output, shape index: {0}]
  %s5 = inlined_call_operand.hbm [shape: f32[1,2], index: 5, kind: output, shape index: {1}]
  %6 = xla_tuple %s4, %s5
  %s7 = sld [smem:[#allocation0]]
  $region38: #{tpu_custom_call.1} parent=0
    _
  %s9 = ssub.s32 1, %s7
  %s10 = scalar_select 0, %s9, %s7
  $region1: #{tpu_custom_call.1} parent=0
    #allocation2 [shape = 'u8[8192]{0}', space=vmem, size = 0x2000, scoped, tag = 'input window, operand 1, single buffered']
    #allocation3 [shape = 's32[1]{0}', space=sflag, size = 0x4, scoped, tag = 'scoped memory for tpu_custom_call.1']
    #allocation4 [shape = 's32[1]{0}', space=sflag, size = 0x4, scoped, tag = 'scoped memory for tpu_custom_call.1']
    #allocation5 [shape = 's32[1]{0}', space=sflag, size = 0x4, scoped, tag = 'scoped memory for tpu_custom_call.1']
    #allocation6 [shape = 'u8[2048]{0}', space=vmem, size = 0x800, scoped, tag = 'output window, operand 0, single buffered']
    #allocation7 [shape = 'u8[512]{0}', space=smem, size = 0x200, scoped, tag = 'output window, operand 1, single buffered']
    %11 = vsyncpa [#allocation3], 0
    %12 = vsyncpa [#allocation4], 0
    %13 = vsyncpa [#allocation5], 0
    // Predicated region
    $region2: #{tpu_custom_call.1} parent=1 // pred_check
      _
    $region3: #{tpu_custom_call.1} parent=1 // pred_check_branch
      %15 = sbr.rel (0) target = $region5
    $region4: #{tpu_custom_call.1} parent=1 // pred_region
      _
    $region5: #{tpu_custom_call.1} parent=1 // pred_fallthru
      _
    // Predicated region
    $region6: #{tpu_custom_call.1} parent=1 // pred_check
      _
    $region7: #{tpu_custom_call.1} parent=1 // pred_check_branch
      %17 = sbr.rel (0) target = $region9
    $region8: #{tpu_custom_call.1} parent=1 // pred_region
      %s19 = ssub.s32 256, 256
      %20 = vsyncadd [#allocation3], %s19
      %s21 = sshll.u32 [#allocation2], 4
      %s22 = int_to_ptr.vmem [resolvable:$true] %s21
      %27 = dma.hbm_to_vmem [thread:$0]  %s1, 256, %s22, [#allocation3], 64, 64, 4
    $region9: #{tpu_custom_call.1} parent=1 // pred_fallthru
      _
    // Predicated region
    $region10: #{tpu_custom_call.1} parent=1 // pred_check
      _
    $region11: #{tpu_custom_call.1} parent=1 // pred_check_branch
      %29 = sbr.rel (0) target = $region13
    $region12: #{tpu_custom_call.1} parent=1 // pred_region
      _
    $region13: #{tpu_custom_call.1} parent=1 // pred_fallthru
      _
    // Predicated region
    $region14: #{tpu_custom_call.1} parent=1 // pred_check
      _
    $region15: #{tpu_custom_call.1} parent=1 // pred_check_branch
      %31 = sbr.rel (0) target = $region17
    $region16: #{tpu_custom_call.1} parent=1 // pred_region
      _
    $region17: #{tpu_custom_call.1} parent=1 // pred_fallthru
      _
    // Predicated region
    $region18: #{tpu_custom_call.1} parent=1 // pred_check
      _
    $region19: #{tpu_custom_call.1} parent=1 // pred_check_branch
      %33 = sbr.rel (0) target = $region21
    $region20: #{tpu_custom_call.1} parent=1 // pred_region
      %34 = dma.done [#allocation3], 256
    $region21: #{tpu_custom_call.1} parent=1 // pred_fallthru
      _
    %v36 = vld [vmem:[%s0] sm:$0xff]
    %v37 = vpack.c.bf16 %v36, %v36
    %v38 = vld [vmem:[#allocation2] sm:$0xf]
    %v39 = vld [vmem:[#allocation2 + $0x4] sm:$0xf]
    %v40 = vld [vmem:[#allocation2 + $0x8] sm:$0xf]
    %v41 = vld [vmem:[#allocation2 + $0xc] sm:$0xf]
    %v42 = vld [vmem:[%s2] sm:$0x1]
    %v44 = vlaneseq
    %v45 = vshrl.u32 %v44, 7
    %v46 = vsub.s32 0, %v45
    %v47 = vrot.slane %v42, %v46
    %v53 = vunpack.c.l.b16 %v38
    %v54 = vunpack.c.l.b16 %v39
    %v55 = vunpack.c.l.b16 %v40
    %v56 = vunpack.c.l.b16 %v41
    %v57 = vpack.c.b16 %v54, %v53
    %v58 = vpack.c.b16 %v56, %v55
    %vm61 = vcmask 261120
    %v63 = vsel %vm61, %v37, 0
    %65 = vmatprep.subr.bf16.mxu0 0
    %66 = vmatpush1.bf16.msra.mxu0 %v57
    %67 = vmatprep.subr.bf16.mxu0 0
    %68 = vmatpush1.bf16.msra.mxu0 %v58
    %69 = vmatprep.subr.bf16.mxu0 0
    %70 = vmatpush1.bf16.msra.mxu0 0
    %71 = vmatprep.subr.bf16.mxu0 0
    %72 = vmatpush1.bf16.msra.mxu0 0
    %73 = vmatprep.subr.bf16.mxu0 0
    %74 = vmatpush1.bf16.msra.mxu0 0
    %75 = vmatprep.subr.bf16.mxu0 0
    %76 = vmatpush1.bf16.msra.mxu0 0
    %77 = vmatprep.subr.bf16.mxu0 0
    %78 = vmatpush1.bf16.msra.mxu0 0
    %79 = vmatprep.subr.bf16.mxu0 0
    %80 = vmatpush1.bf16.msra.mxu0 0
    %81 = vmatprep.subr.bf16.mxu0 0
    %82 = vmatpush1.bf16.msra.mxu0 0
    %83 = vmatprep.subr.bf16.mxu0 0
    %84 = vmatpush1.bf16.msra.mxu0 0
    %85 = vmatprep.subr.bf16.mxu0 0
    %86 = vmatpush1.bf16.msra.mxu0 0
    %87 = vmatprep.subr.bf16.mxu0 0
    %88 = vmatpush1.bf16.msra.mxu0 0
    %89 = vmatprep.subr.bf16.mxu0 0
    %90 = vmatpush1.bf16.msra.mxu0 0
    %91 = vmatprep.subr.bf16.mxu0 0
    %92 = vmatpush1.bf16.msra.mxu0 0
    %93 = vmatprep.subr.bf16.mxu0 0
    %94 = vmatpush1.bf16.msra.mxu0 0
    %95 = vmatprep.subr.bf16.mxu0 0
    %96 = vmatpush1.bf16.msra.mxu0 0
    %97 = vmatprep.mubr.bf16.mxu0 0
    %98 = vmatmul.mubr.bf16.gmra.mrb[0].mxu0 %v63
    %v99 = vpop.f32.mrb[0].mxu0
    %v100 = vadd.f32 %v47, %v99
    %v101 = vpop.f32.mrb[0].mxu0
    %v102 = vpop.f32.mrb[0].mxu0
    %v103 = vpop.f32.mrb[0].mxu0
    %104 = vdwg.mxu0
    %105 = vmax.xlane.f32.xlu0 %v100
    %v106 = vpop.xlane.xlu0 %105
    %v107 = vsub.f32 %v100, %v106
    %v108 = vmul.f32 %v107, 1.442695
    %v109 = vpow.pop %v108
    %110 = vadd.xlane.f32.xlu0 %v109
    %v111 = vpop.xlane.xlu0 %110
    %v112 = vrcp.pop %v111
    %v113 = vmul.f32 %v109, %v112
    %v114 = vpack.c.bf16 %v113, %v113
    %115 = vst [vmem:[#allocation6] sm:$0xf] %v114
    %v116 = vld [vmem:[%s3] sm:$0xff]
    %v117 = vlog2.pop %v111
    %v118 = vmul.f32 %v117, 0.6931472
    %v119 = vadd.f32 %v106, %v118
    %v120 = vlaneseq
    %v121 = vand.u32 %v120, 127
    %122 = vset.pattern.permute.xlu0 0
    %123 = vperm.xlu0 %122, %v116
    %v124 = vpop.permute.xlu0 %123
    %vm125 = vcmp.eq.s32.totalorder %v121, %v124
    %v126 = vsel %vm125, %v100, 0.0
    %127 = vadd.xlane.f32.xlu0 %v126
    %v128 = vpop.xlane.xlu0 %127
    %v129 = vlaneseq
    %v130 = vshrl.u32 %v129, 7
    %s131 = smul.u32 0, 8
    %v132 = vstv %s131
    %v133 = vadd.s32 %v130, %v132
    %vm134 = vcmp.lt.s32.totalorder %v133, 8
    %vm135 = vcmp.ne.s32.totalorder %v116, 4294967196
    %vm136 = vmand %vm134, %vm135
    %v137 = vsub.f32 %v119, %v128
    %v138 = vsel %vm136, %v137, 0.0
    %vm139 = vcmask 7168
    %v140 = vsel %vm139, %v138, 0.0
    %141 = vadd.xlane.f32.xlu0 %v140
    %v142 = vpop.xlane.xlu0 %141
    %v143 = vrot.slane %v142, 4
    %v144 = vadd.f32 %v142, %v143
    %v145 = vrot.slane %v144, 2
    %v146 = vadd.f32 %v144, %v145
    %v147 = vrot.slane %v146, 1
    %v148 = vadd.f32 %v146, %v147
    %s149 = vtos %v148
    %s150 = scalar_lea.smem [#allocation7], 0
    %151 = sst [smem:[%s150]] %s149
    %v152 = vsel %vm136, 1, 0
    %v153 = vcvt.s32.f32 %v152
    %v154 = vsel %vm139, %v153, 0.0
    %155 = vadd.xlane.f32.xlu0 %v154
    %v156 = vpop.xlane.xlu0 %155
    %v157 = vrot.slane %v156, 4
    %v158 = vadd.f32 %v156, %v157
    %v159 = vrot.slane %v158, 2
    %v160 = vadd.f32 %v158, %v159
    %v161 = vrot.slane %v160, 1
    %v162 = vadd.f32 %v160, %v161
    %s163 = vtos %v162
    %s164 = scalar_lea.smem [#allocation7], 1
    %165 = sst [smem:[%s164]] %s163
    // Predicated region
    $region22: #{tpu_custom_call.1} parent=1 // pred_check
      _
    $region23: #{tpu_custom_call.1} parent=1 // pred_check_branch
      %167 = sbr.rel (0) target = $region25
    $region24: #{tpu_custom_call.1} parent=1 // pred_region
      %s169 = ssub.s32 64, 64
      %170 = vsyncadd [#allocation4], %s169
      %s172 = sshll.u32 [#allocation6], 4
      %s173 = int_to_ptr.vmem [resolvable:$true] %s172
      %175 = dma.vmem_to_hbm [thread:$0]  %s173, 64, %s4, [#allocation4]
    $region25: #{tpu_custom_call.1} parent=1 // pred_fallthru
      _
    // Predicated region
    $region26: #{tpu_custom_call.1} parent=1 // pred_check
      _
    $region27: #{tpu_custom_call.1} parent=1 // pred_check_branch
      %177 = sbr.rel (0) target = $region29
    $region28: #{tpu_custom_call.1} parent=1 // pred_region
      %s179 = ssub.s32 16, 16
      %180 = vsyncadd [#allocation5], %s179
      %183 = dma.smem_to_hbm [#allocation7], 16, %s5, [#allocation5]
    $region29: #{tpu_custom_call.1} parent=1 // pred_fallthru
      _
    // Predicated region
    $region30: #{tpu_custom_call.1} parent=1 // pred_check
      _
    $region31: #{tpu_custom_call.1} parent=1 // pred_check_branch
      %185 = sbr.rel (0) target = $region33
    $region32: #{tpu_custom_call.1} parent=1 // pred_region
      %186 = dma.done [#allocation4], 64
    $region33: #{tpu_custom_call.1} parent=1 // pred_fallthru
      _
    // Predicated region
    $region34: #{tpu_custom_call.1} parent=1 // pred_check
      _
    $region35: #{tpu_custom_call.1} parent=1 // pred_check_branch
      %188 = sbr.rel (0) target = $region37
    $region36: #{tpu_custom_call.1} parent=1 // pred_region
      %189 = dma.done [#allocation5], 16
    $region37: #{tpu_custom_call.1} parent=1 // pred_fallthru
      _
    %190 = sfence
    %191 = vsyncpa [#allocation3], 1
    %192 = vsyncpa [#allocation4], 1
    %193 = vsyncpa [#allocation5], 1

</llo_original>
